<compile_context>
chip_gen: v7x
topology: tpu7x:2x2x1
jax: 0.10.0
libtpu: 0.0.40
codegen_flags: <defaults>
</compile_context>

<pallas_src>
import functools

import jax
import jax.numpy as jnp
from jax import lax
from jax.experimental import pallas as pl
from jax.experimental.pallas import tpu as pltpu

C1 = 10  # upconv1 out channels
C2 = 2   # upconv2 out channels


def _round_up(x, m):
    return (x + m - 1) // m * m


def _cdiv(a, b):
    return (a + b - 1) // b


def _pick_chunk(tn_eff, max_chunk):
    """Largest multiple of 128 that divides tn_eff and is <= max_chunk."""
    m = tn_eff // 128
    best = 1
    for c in range(1, m + 1):
        if m % c == 0 and c * 128 <= max_chunk:
            best = c
    return best * 128


def decoder_kernel(x_ref, w_ref, b_ref, w1_ref, b1_ref, w2_ref, b2_ref, o_ref,
                   *, chunk):
    B = x_ref.shape[0]
    tn = w_ref.shape[1]
    n_chunks = tn // chunk

    x = x_ref[...]  # (B, D) bf16, VMEM-resident across the whole grid

    # Hoist the tiny conv parameters (SMEM scalar reads) out of the chunk loop.
    w1 = [w1_ref[c] for c in range(C1)]
    b1 = [b1_ref[c] for c in range(C1)]
    w2_0 = [w2_ref[c, 0] for c in range(C1)]
    w2_1 = [w2_ref[c, 1] for c in range(C1)]
    b2_0 = b2_ref[0]
    b2_1 = b2_ref[1]

    def body(k, carry):
        c0 = pl.multiple_of(k * chunk, 128)

        # Linear: (B, D)bf16 @ (D, chunk)bf16 -> (B, chunk) f32 on the MXU.
        y = jnp.dot(x, w_ref[:, pl.ds(c0, chunk)],
                    preferred_element_type=jnp.float32)
        y = y + b_ref[:, pl.ds(c0, chunk)]

        # upconv1 (1->10, k=1) + relu, upconv2 (10->2, k=1) + relu, fused and
        # unrolled over the 10 hidden channels on the VPU.
        acc0 = jnp.full_like(y, b2_0)
        acc1 = jnp.full_like(y, b2_1)
        for c in range(C1):
            h = jnp.maximum(y * w1[c] + b1[c], 0.0)
            acc0 = acc0 + h * w2_0[c]
            acc1 = acc1 + h * w2_1[c]

        # Lane-dense 2D output: rows [0:B] = channel 0, rows [B:2B] = channel 1.
        o_ref[0:B, pl.ds(c0, chunk)] = jnp.maximum(acc0, 0.0)
        o_ref[B:2 * B, pl.ds(c0, chunk)] = jnp.maximum(acc1, 0.0)
        return carry

    lax.fori_loop(0, n_chunks, body, 0)


def prepare_decoder_params(w_lin, b_lin, w1, b1, w2, b2, *, tn=2304,
                           max_chunk=1024):
    """One-time parameter preparation. Call ONCE and reuse the result.

    Hoists the f32->bf16 cast and the lane padding of the big (D, N) linear
    weight out of the per-call forward path. `w_lin` is the transposed PyTorch
    Linear weight, i.e. shape (encode_dim, n_gene).
    """
    D, N = w_lin.shape

    # Balanced column tiling: tile count from the target tn, then the smallest
    # 128-multiple tile that covers N -> minimal zero padding, even tiles.
    num_tiles = max(1, _cdiv(N, max(int(tn), 128)))
    tn_eff = _round_up(_cdiv(N, num_tiles), 128)
    # Cap so the double-buffered bf16 weight tile stays <= 16 MiB (portable to
    # v7x's 64 MiB per-TC VMEM without exotic scoped-VMEM requests).
    tn_cap = max(128, ((16 << 20) // (2 * D * 2)) // 128 * 128)
    if tn_eff > tn_cap:
        tn_eff = tn_cap
        num_tiles = _cdiv(N, tn_eff)
    n_pad = num_tiles * tn_eff
    chunk = _pick_chunk(tn_eff, max_chunk)

    w = jnp.asarray(w_lin).astype(jnp.bfloat16)
    b = jnp.asarray(b_lin).astype(jnp.float32)
    if n_pad != N:
        w = jnp.pad(w, ((0, 0), (0, n_pad - N)))
        b = jnp.pad(b, (0, n_pad - N))
    b2d = b.reshape(num_tiles, tn_eff)  # row j = bias for column tile j

    # TODO(synk): optional further ~2x — stream the weight as int8/fp8 with
    # per-column scales and dequantize to bf16 in-kernel before the dot.
    return dict(
        w=w, b2d=b2d,
        w1=jnp.asarray(w1, jnp.float32).reshape(C1),
        b1=jnp.asarray(b1, jnp.float32).reshape(C1),
        w2=jnp.asarray(w2, jnp.float32).reshape(C1, C2),
        b2=jnp.asarray(b2, jnp.float32).reshape(C2),
        n=int(N), tn_eff=int(tn_eff), num_tiles=int(num_tiles),
        chunk=int(chunk),
    )


@functools.partial(jax.jit,
                   static_argnames=("n", "tn_eff", "num_tiles", "chunk"))
def _decoder_forward_impl(x, w, b2d, w1, b1, w2, b2, *, n, tn_eff, num_tiles,
                          chunk):
    B = x.shape[0]
    D = x.shape[-1]
    n_pad = num_tiles * tn_eff
    x2d = x.reshape(B, D).astype(jnp.bfloat16)

    smem = pl.BlockSpec(memory_space=pltpu.MemorySpace.SMEM)

    # Scoped-VMEM budget: explicit sum of double-buffered tiles + slack,
    # clamped to <=48 MiB so the identical config also fits v7x (64 MiB/TC).
    w_tile = D * tn_eff * 2           # bf16 weight tile
    o_tile = C2 * B * tn_eff * 4      # f32 output tile
    b_tile = tn_eff * 4               # f32 bias row
    need = 2 * (w_tile + o_tile + b_tile) + 2 * B * D * 2 + (4 << 20)
    vmem_limit = min(max(need, 32 << 20), 48 << 20)

    out2d = pl.pallas_call(
        functools.partial(decoder_kernel, chunk=chunk),
        out_shape=jax.ShapeDtypeStruct((C2 * B, n_pad), jnp.float32),
        grid_spec=pltpu.PrefetchScalarGridSpec(
            num_scalar_prefetch=0,
            grid=(num_tiles,),
            in_specs=[
                pl.BlockSpec((B, D), lambda j: (0, 0)),        # x, VMEM resident
                pl.BlockSpec((D, tn_eff), lambda j: (0, j)),   # streamed weight tile
                pl.BlockSpec((1, tn_eff), lambda j: (j, 0)),   # streamed bias row
                smem,                                          # w1 (10,)
                smem,                                          # b1 (10,)
                smem,                                          # w2 (10, 2)
                smem,                                          # b2 (2,)
            ],
            out_specs=pl.BlockSpec((C2 * B, tn_eff), lambda j: (0, j)),
        ),
        compiler_params=pltpu.CompilerParams(
            dimension_semantics=("parallel",),  # lets v7x shard N-tiles over 2 TCs
            vmem_limit_bytes=vmem_limit,
        ),
    )(x2d, w, b2d, w1, b1, w2, b2)

    # Padded output columns hold relu(bias)-derived garbage; slice them off
    # before any reshaping/reuse.
    out = out2d[:, :n].reshape(C2, B, n)
    return jnp.transpose(out, (1, 0, 2))


def decoder_forward(x, params):
    """x: (B, 1, D) float32, params from prepare_decoder_params -> (B, 2, N)."""
    return _decoder_forward_impl(
        x, params["w"], params["b2d"], params["w1"], params["b1"],
        params["w2"], params["b2"],
        n=params["n"], tn_eff=params["tn_eff"],
        num_tiles=params["num_tiles"], chunk=params["chunk"])


def decoder_reference(x, w_lin, b_lin, w1, b1, w2, b2):
    """Plain-JAX f32 reference matching the PyTorch forward."""
    B, _, D = x.shape
    y = x.reshape(B, D) @ w_lin + b_lin                                # (B, N)
    h = jnp.maximum(y[:, None, :] * w1[None, :, None] + b1[None, :, None], 0.0)
    o = jnp.einsum("bcn,ck->bkn", h, w2) + b2[None, :, None]           # (B, 2, N)
    return jnp.maximum(o, 0.0)


if __name__ == "__main__":
    # Small shapes consistent with the module structure (n_gene, encode_dim
    # scaled down from 18293 / 1000). N deliberately NOT 128-aligned to
    # exercise the padding path.
    B, D, N = 2, 32, 300

    key = jax.random.PRNGKey(0)
    ks = jax.random.split(key, 7)

    # w_lin is the transposed PyTorch Linear weight: (encode_dim, n_gene).
    w_lin = jax.random.uniform(ks[0], (D, N), jnp.float32, -1.0, 1.0) / jnp.sqrt(D)
    b_lin = jax.random.uniform(ks[1], (N,), jnp.float32, -1.0, 1.0) / jnp.sqrt(D)
    # ConvTranspose1d(1, 10, 1) weight (1, 10, 1) -> squeezed to (10,)
    w1 = jax.random.uniform(ks[2], (C1,), jnp.float32, -1.0, 1.0)
    b1 = jax.random.uniform(ks[3], (C1,), jnp.float32, -1.0, 1.0)
    # ConvTranspose1d(10, 2, 1) weight (10, 2, 1) -> squeezed to (10, 2)
    w2 = jax.random.uniform(ks[4], (C1, C2), jnp.float32, -1.0, 1.0) / jnp.sqrt(C1)
    b2 = jax.random.uniform(ks[5], (C2,), jnp.float32, -1.0, 1.0) / jnp.sqrt(C1)

    x = jax.random.normal(ks[6], (B, 1, D), jnp.float32)

    ref = decoder_reference(x, w_lin, b_lin, w1, b1, w2, b2)

    # Default config: one-time weight prep, single padded 384-wide tile.
    params = prepare_decoder_params(w_lin, b_lin, w1, b1, w2, b2)
    out = jax.block_until_ready(decoder_forward(x, params))
    assert out.shape == (B, C2, N), out.shape
    assert jnp.allclose(out, ref, atol=2e-2, rtol=2e-2), "mismatch (default config)"

    # Multi-tile + multi-chunk path: 2 column tiles of 256, epilogue chunk 128
    # (exercises weight streaming and the fori_loop lane-chunked epilogue).
    params2 = prepare_decoder_params(w_lin, b_lin, w1, b1, w2, b2,
                                     tn=256, max_chunk=128)
    out2 = jax.block_until_ready(decoder_forward(x, params2))
    assert out2.shape == (B, C2, N), out2.shape
    assert jnp.allclose(out2, ref, atol=2e-2, rtol=2e-2), "mismatch (tn=256, chunk=128)"

    print("KERNEL_OK")
</pallas_src>

<mosaic_0001>
module attributes {stable_mosaic.version = 11 : i64} {
  func.func @decoder_kernel(%arg0: i32, %arg1: memref<2x32xbf16, #tpu.memory_space<vmem>>, %arg2: memref<32x384xbf16, #tpu.memory_space<vmem>>, %arg3: memref<1x384xf32, #tpu.memory_space<vmem>>, %arg4: memref<10xf32, #tpu.memory_space<smem>>, %arg5: memref<10xf32, #tpu.memory_space<smem>>, %arg6: memref<10x2xf32, #tpu.memory_space<smem>>, %arg7: memref<2xf32, #tpu.memory_space<smem>>, %arg8: memref<4x384xf32, #tpu.memory_space<vmem>>) attributes {dimension_semantics = [#tpu.dimension_semantics<parallel>], iteration_bounds = array<i64: 1>, scalar_prefetch = 0 : i64, scratch_operands = 0 : i64, tpu.core_type = #tpu.core_type<tc>, window_params = [{pipeline_mode = #tpu.pipeline_mode<synchronous>, transform_indices = @transform_0, window_bounds = array<i64: 2, 32>}, {transform_indices = @transform_1, window_bounds = array<i64: 32, 384>}, {transform_indices = @transform_2, window_bounds = array<i64: 1, 384>}, {transform_indices = @transform_3, window_bounds = array<i64: 10>}, {transform_indices = @transform_4, window_bounds = array<i64: 10>}, {transform_indices = @transform_5, window_bounds = array<i64: 10, 2>}, {transform_indices = @transform_6, window_bounds = array<i64: 2>}, {transform_indices = @transform_7, window_bounds = array<i64: 4, 384>}]} {
    %c0 = arith.constant 0 : index
    %c0_0 = arith.constant 0 : index
    %0 = vector.load %arg1[%c0, %c0_0] : memref<2x32xbf16, #tpu.memory_space<vmem>>, vector<2x32xbf16>
    %c0_1 = arith.constant 0 : index
    %1 = memref.load %arg4[%c0_1] : memref<10xf32, #tpu.memory_space<smem>>
    %c1 = arith.constant 1 : index
    %2 = memref.load %arg4[%c1] : memref<10xf32, #tpu.memory_space<smem>>
    %c2 = arith.constant 2 : index
    %3 = memref.load %arg4[%c2] : memref<10xf32, #tpu.memory_space<smem>>
    %c3 = arith.constant 3 : index
    %4 = memref.load %arg4[%c3] : memref<10xf32, #tpu.memory_space<smem>>
    %c4 = arith.constant 4 : index
    %5 = memref.load %arg4[%c4] : memref<10xf32, #tpu.memory_space<smem>>
    %c5 = arith.constant 5 : index
    %6 = memref.load %arg4[%c5] : memref<10xf32, #tpu.memory_space<smem>>
    %c6 = arith.constant 6 : index
    %7 = memref.load %arg4[%c6] : memref<10xf32, #tpu.memory_space<smem>>
    %c7 = arith.constant 7 : index
    %8 = memref.load %arg4[%c7] : memref<10xf32, #tpu.memory_space<smem>>
    %c8 = arith.constant 8 : index
    %9 = memref.load %arg4[%c8] : memref<10xf32, #tpu.memory_space<smem>>
    %c9 = arith.constant 9 : index
    %10 = memref.load %arg4[%c9] : memref<10xf32, #tpu.memory_space<smem>>
    %c0_2 = arith.constant 0 : index
    %11 = memref.load %arg5[%c0_2] : memref<10xf32, #tpu.memory_space<smem>>
    %c1_3 = arith.constant 1 : index
    %12 = memref.load %arg5[%c1_3] : memref<10xf32, #tpu.memory_space<smem>>
    %c2_4 = arith.constant 2 : index
    %13 = memref.load %arg5[%c2_4] : memref<10xf32, #tpu.memory_space<smem>>
    %c3_5 = arith.constant 3 : index
    %14 = memref.load %arg5[%c3_5] : memref<10xf32, #tpu.memory_space<smem>>
    %c4_6 = arith.constant 4 : index
    %15 = memref.load %arg5[%c4_6] : memref<10xf32, #tpu.memory_space<smem>>
    %c5_7 = arith.constant 5 : index
    %16 = memref.load %arg5[%c5_7] : memref<10xf32, #tpu.memory_space<smem>>
    %c6_8 = arith.constant 6 : index
    %17 = memref.load %arg5[%c6_8] : memref<10xf32, #tpu.memory_space<smem>>
    %c7_9 = arith.constant 7 : index
    %18 = memref.load %arg5[%c7_9] : memref<10xf32, #tpu.memory_space<smem>>
    %c8_10 = arith.constant 8 : index
    %19 = memref.load %arg5[%c8_10] : memref<10xf32, #tpu.memory_space<smem>>
    %c9_11 = arith.constant 9 : index
    %20 = memref.load %arg5[%c9_11] : memref<10xf32, #tpu.memory_space<smem>>
    %c0_12 = arith.constant 0 : index
    %c0_13 = arith.constant 0 : index
    %21 = memref.load %arg6[%c0_12, %c0_13] : memref<10x2xf32, #tpu.memory_space<smem>>
    %c1_14 = arith.constant 1 : index
    %c0_15 = arith.constant 0 : index
    %22 = memref.load %arg6[%c1_14, %c0_15] : memref<10x2xf32, #tpu.memory_space<smem>>
    %c2_16 = arith.constant 2 : index
    %c0_17 = arith.constant 0 : index
    %23 = memref.load %arg6[%c2_16, %c0_17] : memref<10x2xf32, #tpu.memory_space<smem>>
    %c3_18 = arith.constant 3 : index
    %c0_19 = arith.constant 0 : index
    %24 = memref.load %arg6[%c3_18, %c0_19] : memref<10x2xf32, #tpu.memory_space<smem>>
    %c4_20 = arith.constant 4 : index
    %c0_21 = arith.constant 0 : index
    %25 = memref.load %arg6[%c4_20, %c0_21] : memref<10x2xf32, #tpu.memory_space<smem>>
    %c5_22 = arith.constant 5 : index
    %c0_23 = arith.constant 0 : index
    %26 = memref.load %arg6[%c5_22, %c0_23] : memref<10x2xf32, #tpu.memory_space<smem>>
    %c6_24 = arith.constant 6 : index
    %c0_25 = arith.constant 0 : index
    %27 = memref.load %arg6[%c6_24, %c0_25] : memref<10x2xf32, #tpu.memory_space<smem>>
    %c7_26 = arith.constant 7 : index
    %c0_27 = arith.constant 0 : index
    %28 = memref.load %arg6[%c7_26, %c0_27] : memref<10x2xf32, #tpu.memory_space<smem>>
    %c8_28 = arith.constant 8 : index
    %c0_29 = arith.constant 0 : index
    %29 = memref.load %arg6[%c8_28, %c0_29] : memref<10x2xf32, #tpu.memory_space<smem>>
    %c9_30 = arith.constant 9 : index
    %c0_31 = arith.constant 0 : index
    %30 = memref.load %arg6[%c9_30, %c0_31] : memref<10x2xf32, #tpu.memory_space<smem>>
    %c0_32 = arith.constant 0 : index
    %c1_33 = arith.constant 1 : index
    %31 = memref.load %arg6[%c0_32, %c1_33] : memref<10x2xf32, #tpu.memory_space<smem>>
    %c1_34 = arith.constant 1 : index
    %c1_35 = arith.constant 1 : index
    %32 = memref.load %arg6[%c1_34, %c1_35] : memref<10x2xf32, #tpu.memory_space<smem>>
    %c2_36 = arith.constant 2 : index
    %c1_37 = arith.constant 1 : index
    %33 = memref.load %arg6[%c2_36, %c1_37] : memref<10x2xf32, #tpu.memory_space<smem>>
    %c3_38 = arith.constant 3 : index
    %c1_39 = arith.constant 1 : index
    %34 = memref.load %arg6[%c3_38, %c1_39] : memref<10x2xf32, #tpu.memory_space<smem>>
    %c4_40 = arith.constant 4 : index
    %c1_41 = arith.constant 1 : index
    %35 = memref.load %arg6[%c4_40, %c1_41] : memref<10x2xf32, #tpu.memory_space<smem>>
    %c5_42 = arith.constant 5 : index
    %c1_43 = arith.constant 1 : index
    %36 = memref.load %arg6[%c5_42, %c1_43] : memref<10x2xf32, #tpu.memory_space<smem>>
    %c6_44 = arith.constant 6 : index
    %c1_45 = arith.constant 1 : index
    %37 = memref.load %arg6[%c6_44, %c1_45] : memref<10x2xf32, #tpu.memory_space<smem>>
    %c7_46 = arith.constant 7 : index
    %c1_47 = arith.constant 1 : index
    %38 = memref.load %arg6[%c7_46, %c1_47] : memref<10x2xf32, #tpu.memory_space<smem>>
    %c8_48 = arith.constant 8 : index
    %c1_49 = arith.constant 1 : index
    %39 = memref.load %arg6[%c8_48, %c1_49] : memref<10x2xf32, #tpu.memory_space<smem>>
    %c9_50 = arith.constant 9 : index
    %c1_51 = arith.constant 1 : index
    %40 = memref.load %arg6[%c9_50, %c1_51] : memref<10x2xf32, #tpu.memory_space<smem>>
    %c0_52 = arith.constant 0 : index
    %41 = memref.load %arg7[%c0_52] : memref<2xf32, #tpu.memory_space<smem>>
    %c1_53 = arith.constant 1 : index
    %42 = memref.load %arg7[%c1_53] : memref<2xf32, #tpu.memory_space<smem>>
    %c0_i32 = arith.constant 0 : i32
    %c384_i32 = arith.constant 384 : i32
    %43 = arith.muli %c0_i32, %c384_i32 : i32
    %44 = tpu.assume_multiple %43, 128 : i32
    %c0_54 = arith.constant 0 : index
    %45 = arith.index_cast %44 : i32 to index
    %46 = vector.load %arg2[%c0_54, %45] : memref<32x384xbf16, #tpu.memory_space<vmem>>, vector<32x384xbf16>
    %cst = arith.constant dense<0.000000e+00> : vector<2x384xf32>
    %47 = tpu.matmul %0, %46, %cst {dimension_numbers = #tpu.dot_dimension_numbers<[1], [0], [0], [1], [0, 0, 1, 1], [], []>} : vector<2x32xbf16>, vector<32x384xbf16>, vector<2x384xf32> -> vector<2x384xf32>
    %c0_55 = arith.constant 0 : index
    %48 = arith.index_cast %44 : i32 to index
    %49 = vector.load %arg3[%c0_55, %48] : memref<1x384xf32, #tpu.memory_space<vmem>>, vector<1x384xf32>
    %50 = vector.broadcast %49 : vector<1x384xf32> to vector<2x384xf32>
    %51 = arith.addf %47, %50 : vector<2x384xf32>
    %52 = vector.broadcast %41 : f32 to vector<2x384xf32>
    %53 = vector.broadcast %42 : f32 to vector<2x384xf32>
    %54 = vector.broadcast %1 : f32 to vector<2x384xf32>
    %55 = arith.mulf %51, %54 : vector<2x384xf32>
    %56 = vector.broadcast %11 : f32 to vector<2x384xf32>
    %57 = arith.addf %55, %56 : vector<2x384xf32>
    %cst_56 = arith.constant 0.000000e+00 : f32
    %58 = vector.broadcast %cst_56 : f32 to vector<2x384xf32>
    %59 = arith.maximumf %57, %58 : vector<2x384xf32>
    %60 = vector.broadcast %21 : f32 to vector<2x384xf32>
    %61 = arith.mulf %59, %60 : vector<2x384xf32>
    %62 = arith.addf %52, %61 : vector<2x384xf32>
    %63 = vector.broadcast %31 : f32 to vector<2x384xf32>
    %64 = arith.mulf %59, %63 : vector<2x384xf32>
    %65 = arith.addf %53, %64 : vector<2x384xf32>
    %66 = vector.broadcast %2 : f32 to vector<2x384xf32>
    %67 = arith.mulf %51, %66 : vector<2x384xf32>
    %68 = vector.broadcast %12 : f32 to vector<2x384xf32>
    %69 = arith.addf %67, %68 : vector<2x384xf32>
    %cst_57 = arith.constant 0.000000e+00 : f32
    %70 = vector.broadcast %cst_57 : f32 to vector<2x384xf32>
    %71 = arith.maximumf %69, %70 : vector<2x384xf32>
    %72 = vector.broadcast %22 : f32 to vector<2x384xf32>
    %73 = arith.mulf %71, %72 : vector<2x384xf32>
    %74 = arith.addf %62, %73 : vector<2x384xf32>
    %75 = vector.broadcast %32 : f32 to vector<2x384xf32>
    %76 = arith.mulf %71, %75 : vector<2x384xf32>
    %77 = arith.addf %65, %76 : vector<2x384xf32>
    %78 = vector.broadcast %3 : f32 to vector<2x384xf32>
    %79 = arith.mulf %51, %78 : vector<2x384xf32>
    %80 = vector.broadcast %13 : f32 to vector<2x384xf32>
    %81 = arith.addf %79, %80 : vector<2x384xf32>
    %cst_58 = arith.constant 0.000000e+00 : f32
    %82 = vector.broadcast %cst_58 : f32 to vector<2x384xf32>
    %83 = arith.maximumf %81, %82 : vector<2x384xf32>
    %84 = vector.broadcast %23 : f32 to vector<2x384xf32>
    %85 = arith.mulf %83, %84 : vector<2x384xf32>
    %86 = arith.addf %74, %85 : vector<2x384xf32>
    %87 = vector.broadcast %33 : f32 to vector<2x384xf32>
    %88 = arith.mulf %83, %87 : vector<2x384xf32>
    %89 = arith.addf %77, %88 : vector<2x384xf32>
    %90 = vector.broadcast %4 : f32 to vector<2x384xf32>
    %91 = arith.mulf %51, %90 : vector<2x384xf32>
    %92 = vector.broadcast %14 : f32 to vector<2x384xf32>
    %93 = arith.addf %91, %92 : vector<2x384xf32>
    %cst_59 = arith.constant 0.000000e+00 : f32
    %94 = vector.broadcast %cst_59 : f32 to vector<2x384xf32>
    %95 = arith.maximumf %93, %94 : vector<2x384xf32>
    %96 = vector.broadcast %24 : f32 to vector<2x384xf32>
    %97 = arith.mulf %95, %96 : vector<2x384xf32>
    %98 = arith.addf %86, %97 : vector<2x384xf32>
    %99 = vector.broadcast %34 : f32 to vector<2x384xf32>
    %100 = arith.mulf %95, %99 : vector<2x384xf32>
    %101 = arith.addf %89, %100 : vector<2x384xf32>
    %102 = vector.broadcast %5 : f32 to vector<2x384xf32>
    %103 = arith.mulf %51, %102 : vector<2x384xf32>
    %104 = vector.broadcast %15 : f32 to vector<2x384xf32>
    %105 = arith.addf %103, %104 : vector<2x384xf32>
    %cst_60 = arith.constant 0.000000e+00 : f32
    %106 = vector.broadcast %cst_60 : f32 to vector<2x384xf32>
    %107 = arith.maximumf %105, %106 : vector<2x384xf32>
    %108 = vector.broadcast %25 : f32 to vector<2x384xf32>
    %109 = arith.mulf %107, %108 : vector<2x384xf32>
    %110 = arith.addf %98, %109 : vector<2x384xf32>
    %111 = vector.broadcast %35 : f32 to vector<2x384xf32>
    %112 = arith.mulf %107, %111 : vector<2x384xf32>
    %113 = arith.addf %101, %112 : vector<2x384xf32>
    %114 = vector.broadcast %6 : f32 to vector<2x384xf32>
    %115 = arith.mulf %51, %114 : vector<2x384xf32>
    %116 = vector.broadcast %16 : f32 to vector<2x384xf32>
    %117 = arith.addf %115, %116 : vector<2x384xf32>
    %cst_61 = arith.constant 0.000000e+00 : f32
    %118 = vector.broadcast %cst_61 : f32 to vector<2x384xf32>
    %119 = arith.maximumf %117, %118 : vector<2x384xf32>
    %120 = vector.broadcast %26 : f32 to vector<2x384xf32>
    %121 = arith.mulf %119, %120 : vector<2x384xf32>
    %122 = arith.addf %110, %121 : vector<2x384xf32>
    %123 = vector.broadcast %36 : f32 to vector<2x384xf32>
    %124 = arith.mulf %119, %123 : vector<2x384xf32>
    %125 = arith.addf %113, %124 : vector<2x384xf32>
    %126 = vector.broadcast %7 : f32 to vector<2x384xf32>
    %127 = arith.mulf %51, %126 : vector<2x384xf32>
    %128 = vector.broadcast %17 : f32 to vector<2x384xf32>
    %129 = arith.addf %127, %128 : vector<2x384xf32>
    %cst_62 = arith.constant 0.000000e+00 : f32
    %130 = vector.broadcast %cst_62 : f32 to vector<2x384xf32>
    %131 = arith.maximumf %129, %130 : vector<2x384xf32>
    %132 = vector.broadcast %27 : f32 to vector<2x384xf32>
    %133 = arith.mulf %131, %132 : vector<2x384xf32>
    %134 = arith.addf %122, %133 : vector<2x384xf32>
    %135 = vector.broadcast %37 : f32 to vector<2x384xf32>
    %136 = arith.mulf %131, %135 : vector<2x384xf32>
    %137 = arith.addf %125, %136 : vector<2x384xf32>
    %138 = vector.broadcast %8 : f32 to vector<2x384xf32>
    %139 = arith.mulf %51, %138 : vector<2x384xf32>
    %140 = vector.broadcast %18 : f32 to vector<2x384xf32>
    %141 = arith.addf %139, %140 : vector<2x384xf32>
    %cst_63 = arith.constant 0.000000e+00 : f32
    %142 = vector.broadcast %cst_63 : f32 to vector<2x384xf32>
    %143 = arith.maximumf %141, %142 : vector<2x384xf32>
    %144 = vector.broadcast %28 : f32 to vector<2x384xf32>
    %145 = arith.mulf %143, %144 : vector<2x384xf32>
    %146 = arith.addf %134, %145 : vector<2x384xf32>
    %147 = vector.broadcast %38 : f32 to vector<2x384xf32>
    %148 = arith.mulf %143, %147 : vector<2x384xf32>
    %149 = arith.addf %137, %148 : vector<2x384xf32>
    %150 = vector.broadcast %9 : f32 to vector<2x384xf32>
    %151 = arith.mulf %51, %150 : vector<2x384xf32>
    %152 = vector.broadcast %19 : f32 to vector<2x384xf32>
    %153 = arith.addf %151, %152 : vector<2x384xf32>
    %cst_64 = arith.constant 0.000000e+00 : f32
    %154 = vector.broadcast %cst_64 : f32 to vector<2x384xf32>
    %155 = arith.maximumf %153, %154 : vector<2x384xf32>
    %156 = vector.broadcast %29 : f32 to vector<2x384xf32>
    %157 = arith.mulf %155, %156 : vector<2x384xf32>
    %158 = arith.addf %146, %157 : vector<2x384xf32>
    %159 = vector.broadcast %39 : f32 to vector<2x384xf32>
    %160 = arith.mulf %155, %159 : vector<2x384xf32>
    %161 = arith.addf %149, %160 : vector<2x384xf32>
    %162 = vector.broadcast %10 : f32 to vector<2x384xf32>
    %163 = arith.mulf %51, %162 : vector<2x384xf32>
    %164 = vector.broadcast %20 : f32 to vector<2x384xf32>
    %165 = arith.addf %163, %164 : vector<2x384xf32>
    %cst_65 = arith.constant 0.000000e+00 : f32
    %166 = vector.broadcast %cst_65 : f32 to vector<2x384xf32>
    %167 = arith.maximumf %165, %166 : vector<2x384xf32>
    %168 = vector.broadcast %30 : f32 to vector<2x384xf32>
    %169 = arith.mulf %167, %168 : vector<2x384xf32>
    %170 = arith.addf %158, %169 : vector<2x384xf32>
    %171 = vector.broadcast %40 : f32 to vector<2x384xf32>
    %172 = arith.mulf %167, %171 : vector<2x384xf32>
    %173 = arith.addf %161, %172 : vector<2x384xf32>
    %cst_66 = arith.constant 0.000000e+00 : f32
    %174 = vector.broadcast %cst_66 : f32 to vector<2x384xf32>
    %175 = arith.maximumf %170, %174 : vector<2x384xf32>
    %c0_67 = arith.constant 0 : index
    %176 = arith.index_cast %44 : i32 to index
    %177 = vector.load %arg8[%c0_67, %176] : memref<4x384xf32, #tpu.memory_space<vmem>>, vector<2x384xf32>
    tpu.vector_store %arg8[%c0_67, %176], %175 {strides = array<i32>} : memref<4x384xf32, #tpu.memory_space<vmem>>, vector<2x384xf32>,
    %cst_68 = arith.constant 0.000000e+00 : f32
    %178 = vector.broadcast %cst_68 : f32 to vector<2x384xf32>
    %179 = arith.maximumf %173, %178 : vector<2x384xf32>
    %c2_69 = arith.constant 2 : index
    %180 = arith.index_cast %44 : i32 to index
    %181 = vector.load %arg8[%c2_69, %180] : memref<4x384xf32, #tpu.memory_space<vmem>>, vector<2x384xf32>
    tpu.vector_store %arg8[%c2_69, %180], %179 {strides = array<i32>} : memref<4x384xf32, #tpu.memory_space<vmem>>, vector<2x384xf32>,
    %c1_i32 = arith.constant 1 : i32
    return
  }
  func.func @transform_0(%arg0: i32) -> (i32, i32) {
    %c0_i32 = arith.constant 0 : i32
    %c0_i32_0 = arith.constant 0 : i32
    %c0_i32_1 = arith.constant 0 : i32
    return %c0_i32, %c0_i32_0 : i32, i32
  }
  func.func @transform_1(%arg0: i32) -> (i32, i32) {
    %c0_i32 = arith.constant 0 : i32
    %c0_i32_0 = arith.constant 0 : i32
    return %c0_i32, %arg0 : i32, i32
  }
  func.func @transform_2(%arg0: i32) -> (i32, i32) {
    %c0_i32 = arith.constant 0 : i32
    %c0_i32_0 = arith.constant 0 : i32
    return %arg0, %c0_i32 : i32, i32
  }
  func.func @transform_3(%arg0: i32) -> i32 {
    %c0_i32 = arith.constant 0 : i32
    %c0_i32_0 = arith.constant 0 : i32
    return %c0_i32 : i32
  }
  func.func @transform_4(%arg0: i32) -> i32 {
    %c0_i32 = arith.constant 0 : i32
    %c0_i32_0 = arith.constant 0 : i32
    return %c0_i32 : i32
  }
  func.func @transform_5(%arg0: i32) -> (i32, i32) {
    %c0_i32 = arith.constant 0 : i32
    %c0_i32_0 = arith.constant 0 : i32
    %c0_i32_1 = arith.constant 0 : i32
    return %c0_i32, %c0_i32_0 : i32, i32
  }
  func.func @transform_6(%arg0: i32) -> i32 {
    %c0_i32 = arith.constant 0 : i32
    %c0_i32_0 = arith.constant 0 : i32
    return %c0_i32 : i32
  }
  func.func @transform_7(%arg0: i32) -> (i32, i32) {
    %c0_i32 = arith.constant 0 : i32
    %c0_i32_0 = arith.constant 0 : i32
    return %c0_i32, %arg0 : i32, i32
  }
}

</mosaic_0001>

<llo_original>
// kernel: _decoder_forward_impl.1
$region0: #{_decoder_forward_impl.1}
  #allocation0 [shape = 'u32[]', space=smem, size = 0x4, offset = 0x4, fixed_abs, tag = 'smem constant byte address 0x4 - core index']
  #allocation1 [shape = 'u32[144,128]{1,0:T(1,128)}', space=vmem, size = 0x12000, scoped, tag = 'internal scratch']
  %s0 = inlined_call_operand.vmem [shape: bf16[2,32], index: 0, kind: input, shape index: {}]
  %s1 = inlined_call_operand.hbm [shape: bf16[32,384], index: 1, kind: input, shape index: {}]
  %s2 = inlined_call_operand.vmem [shape: f32[1,384], index: 2, kind: input, shape index: {}]
  %s3 = inlined_call_operand.vmem [shape: f32[10], index: 3, kind: input, shape index: {}]
  %s4 = inlined_call_operand.vmem [shape: f32[10], index: 4, kind: input, shape index: {}]
  %s5 = inlined_call_operand.vmem [shape: f32[10,2], index: 5, kind: input, shape index: {}]
  %s6 = inlined_call_operand.vmem [shape: f32[2], index: 6, kind: input, shape index: {}]
  %s7 = inlined_call_operand.vmem [shape: f32[4,384], index: 7, kind: output, shape index: {}]
  %s8 = sld [smem:[#allocation0]]
  $region58: #{_decoder_forward_impl.1} parent=0
    _
  %s10 = ssub.s32 1, %s8
  %s11 = scalar_select 0, %s10, %s8
  $region1: #{_decoder_forward_impl.1} parent=0
    #allocation2 [shape = 'u8[24576]{0}', space=vmem, size = 0x6000, scoped, tag = 'input window, operand 1, single buffered']
    #allocation3 [shape = 's32[1]{0}', space=sflag, size = 0x4, scoped, tag = 'scoped memory for _decoder_forward_impl.1']
    #allocation4 [shape = 's32[1]{0}', space=sflag, size = 0x4, scoped, tag = 'scoped memory for _decoder_forward_impl.1']
    #allocation5 [shape = 'u8[512]{0}', space=smem, size = 0x200, scoped, tag = 'input window, operand 3, single buffered']
    #allocation6 [shape = 'u8[512]{0}', space=smem, size = 0x200, scoped, tag = 'input window, operand 4, single buffered']
    #allocation7 [shape = 's32[1]{0}', space=sflag, size = 0x4, scoped, tag = 'scoped memory for _decoder_forward_impl.1']
    #allocation8 [shape = 'u8[8192]{0}', space=smem, size = 0x2000, scoped, tag = 'input window, operand 5, single buffered']
    #allocation9 [shape = 'u8[512]{0}', space=smem, size = 0x200, scoped, tag = 'input window, operand 6, single buffered']
    #allocation10 [shape = 's32[1]{0}', space=sflag, size = 0x4, scoped, tag = 'scoped memory for _decoder_forward_impl.1']
    %12 = vsyncpa [#allocation3], 0
    %13 = vsyncpa [#allocation4], 0
    %14 = vsyncpa [#allocation7], 0
    %15 = vsyncpa [#allocation10], 0
    // Predicated region
    $region2: #{_decoder_forward_impl.1} parent=1 // pred_check
      _
    $region3: #{_decoder_forward_impl.1} parent=1 // pred_check_branch
      %17 = sbr.rel (0) target = $region5
    $region4: #{_decoder_forward_impl.1} parent=1 // pred_region
      _
    $region5: #{_decoder_forward_impl.1} parent=1 // pred_fallthru
      _
    // Predicated region
    $region6: #{_decoder_forward_impl.1} parent=1 // pred_check
      _
    $region7: #{_decoder_forward_impl.1} parent=1 // pred_check_branch
      %19 = sbr.rel (0) target = $region9
    $region8: #{_decoder_forward_impl.1} parent=1 // pred_region
      %s21 = ssub.s32 768, 768
      %22 = vsyncadd [#allocation3], %s21
      %s23 = sshll.u32 [#allocation2], 4
      %s24 = int_to_ptr.vmem [resolvable:$true] %s23
      %29 = dma.hbm_to_vmem [thread:$0]  %s1, 768, %s24, [#allocation3], 192, 192, 12
    $region9: #{_decoder_forward_impl.1} parent=1 // pred_fallthru
      _
    // Predicated region
    $region10: #{_decoder_forward_impl.1} parent=1 // pred_check
      _
    $region11: #{_decoder_forward_impl.1} parent=1 // pred_check_branch
      %31 = sbr.rel (0) target = $region13
    $region12: #{_decoder_forward_impl.1} parent=1 // pred_region
      _
    $region13: #{_decoder_forward_impl.1} parent=1 // pred_fallthru
      _
    // Predicated region
    $region14: #{_decoder_forward_impl.1} parent=1 // pred_check
      _
    $region15: #{_decoder_forward_impl.1} parent=1 // pred_check_branch
      %33 = sbr.rel (0) target = $region17
    $region16: #{_decoder_forward_impl.1} parent=1 // pred_region
      %s35 = ssub.s32 16, 16
      %36 = vsyncadd [#allocation4], %s35
      %s38 = sshll.u32 %s3, 4
      %s39 = int_to_ptr.vmem [resolvable:$true] %s38
      %41 = dma.vmem_to_smem %s39, 16, [#allocation5], [#allocation4]
    $region17: #{_decoder_forward_impl.1} parent=1 // pred_fallthru
      _
    // Predicated region
    $region18: #{_decoder_forward_impl.1} parent=1 // pred_check
      _
    $region19: #{_decoder_forward_impl.1} parent=1 // pred_check_branch
      %43 = sbr.rel (0) target = $region21
    $region20: #{_decoder_forward_impl.1} parent=1 // pred_region
      %s45 = ssub.s32 16, 16
      %46 = vsyncadd [#allocation7], %s45
      %s48 = sshll.u32 %s4, 4
      %s49 = int_to_ptr.vmem [resolvable:$true] %s48
      %51 = dma.vmem_to_smem %s49, 16, [#allocation6], [#allocation7]
    $region21: #{_decoder_forward_impl.1} parent=1 // pred_fallthru
      _
    // Predicated region
    $region22: #{_decoder_forward_impl.1} parent=1 // pred_check
      _
    $region23: #{_decoder_forward_impl.1} parent=1 // pred_check_branch
      %53 = sbr.rel (0) target = $region25
    $region24: #{_decoder_forward_impl.1} parent=1 // pred_region
      %s55 = ssub.s32 256, 256
      %56 = vsyncadd [#allocation7], %s55
      %s57 = sshll.u32 %s5, 4
      %s58 = int_to_ptr.vmem [resolvable:$true] %s57
      %63 = dma.vmem_to_smem %s58, 256, [#allocation8], [#allocation7], 128, 128, 8
    $region25: #{_decoder_forward_impl.1} parent=1 // pred_fallthru
      _
    // Predicated region
    $region26: #{_decoder_forward_impl.1} parent=1 // pred_check
      _
    $region27: #{_decoder_forward_impl.1} parent=1 // pred_check_branch
      %65 = sbr.rel (0) target = $region29
    $region28: #{_decoder_forward_impl.1} parent=1 // pred_region
      %s67 = ssub.s32 16, 16
      %68 = vsyncadd [#allocation10], %s67
      %s70 = sshll.u32 %s6, 4
      %s71 = int_to_ptr.vmem [resolvable:$true] %s70
      %73 = dma.vmem_to_smem %s71, 16, [#allocation9], [#allocation10]
    $region29: #{_decoder_forward_impl.1} parent=1 // pred_fallthru
      _
    // Predicated region
    $region30: #{_decoder_forward_impl.1} parent=1 // pred_check
      _
    $region31: #{_decoder_forward_impl.1} parent=1 // pred_check_branch
      %75 = sbr.rel (0) target = $region33
    $region32: #{_decoder_forward_impl.1} parent=1 // pred_region
      %76 = dma.done [#allocation3], 768
    $region33: #{_decoder_forward_impl.1} parent=1 // pred_fallthru
      _
    // Predicated region
    $region34: #{_decoder_forward_impl.1} parent=1 // pred_check
      _
    $region35: #{_decoder_forward_impl.1} parent=1 // pred_check_branch
      %78 = sbr.rel (0) target = $region37
    $region36: #{_decoder_forward_impl.1} parent=1 // pred_region
      %79 = dma.done [#allocation4], 16
    $region37: #{_decoder_forward_impl.1} parent=1 // pred_fallthru
      _
    // Predicated region
    $region38: #{_decoder_forward_impl.1} parent=1 // pred_check
      _
    $region39: #{_decoder_forward_impl.1} parent=1 // pred_check_branch
      %81 = sbr.rel (0) target = $region41
    $region40: #{_decoder_forward_impl.1} parent=1 // pred_region
      %82 = dma.done [#allocation7], 16
    $region41: #{_decoder_forward_impl.1} parent=1 // pred_fallthru
      _
    // Predicated region
    $region42: #{_decoder_forward_impl.1} parent=1 // pred_check
      _
    $region43: #{_decoder_forward_impl.1} parent=1 // pred_check_branch
      %84 = sbr.rel (0) target = $region45
    $region44: #{_decoder_forward_impl.1} parent=1 // pred_region
      %85 = dma.done [#allocation7], 256
    $region45: #{_decoder_forward_impl.1} parent=1 // pred_fallthru
      _
    // Predicated region
    $region46: #{_decoder_forward_impl.1} parent=1 // pred_check
      _
    $region47: #{_decoder_forward_impl.1} parent=1 // pred_check_branch
      %87 = sbr.rel (0) target = $region49
    $region48: #{_decoder_forward_impl.1} parent=1 // pred_region
      %88 = dma.done [#allocation10], 16
    $region49: #{_decoder_forward_impl.1} parent=1 // pred_fallthru
      _
    %89 = sfence
    %v91 = vld [vmem:[%s0] sm:$0x1]
    %s92 = sld [smem:[#allocation5]]
    %s93 = sld [smem:[#allocation5 + $0x1]]
    %s94 = sld [smem:[#allocation5 + $0x2]]
    %s95 = sld [smem:[#allocation5 + $0x3]]
    %s96 = sld [smem:[#allocation5 + $0x4]]
    %s97 = sld [smem:[#allocation5 + $0x5]]
    %s98 = sld [smem:[#allocation5 + $0x6]]
    %s99 = sld [smem:[#allocation5 + $0x7]]
    %s100 = sld [smem:[#allocation5 + $0x8]]
    %s101 = sld [smem:[#allocation5 + $0x9]]
    %s102 = sld [smem:[#allocation6]]
    %s103 = sld [smem:[#allocation6 + $0x1]]
    %s104 = sld [smem:[#allocation6 + $0x2]]
    %s105 = sld [smem:[#allocation6 + $0x3]]
    %s106 = sld [smem:[#allocation6 + $0x4]]
    %s107 = sld [smem:[#allocation6 + $0x5]]
    %s108 = sld [smem:[#allocation6 + $0x6]]
    %s109 = sld [smem:[#allocation6 + $0x7]]
    %s110 = sld [smem:[#allocation6 + $0x8]]
    %s111 = sld [smem:[#allocation6 + $0x9]]
    %s112 = sld [smem:[#allocation8]]
    %s113 = sld [smem:[#allocation8 + $0x80]]
    %s114 = sld [smem:[#allocation8 + $0x100]]
    %s115 = sld [smem:[#allocation8 + $0x180]]
    %s116 = sld [smem:[#allocation8 + $0x200]]
    %s117 = sld [smem:[#allocation8 + $0x280]]
    %s118 = sld [smem:[#allocation8 + $0x300]]
    %s119 = sld [smem:[#allocation8 + $0x380]]
    %s120 = sld [smem:[#allocation8 + $0x400]]
    %s121 = sld [smem:[#allocation8 + $0x480]]
    %s122 = sld [smem:[#allocation8 + $0x1]]
    %s123 = sld [smem:[#allocation8 + $0x81]]
    %s124 = sld [smem:[#allocation8 + $0x101]]
    %s125 = sld [smem:[#allocation8 + $0x181]]
    %s126 = sld [smem:[#allocation8 + $0x201]]
    %s127 = sld [smem:[#allocation8 + $0x281]]
    %s128 = sld [smem:[#allocation8 + $0x301]]
    %s129 = sld [smem:[#allocation8 + $0x381]]
    %s130 = sld [smem:[#allocation8 + $0x401]]
    %s131 = sld [smem:[#allocation8 + $0x481]]
    %s132 = sld [smem:[#allocation9]]
    %s133 = sld [smem:[#allocation9 + $0x1]]
    %v134 = vld [vmem:[#allocation2] sm:$0xff]
    %v135 = vld [vmem:[#allocation2 + $0x8] sm:$0xf]
    %v136 = vld [vmem:[#allocation2 + $0xc] sm:$0xff]
    %v137 = vld [vmem:[#allocation2 + $0x14] sm:$0xf]
    %v138 = vld [vmem:[#allocation2 + $0x18] sm:$0xff]
    %v139 = vld [vmem:[#allocation2 + $0x20] sm:$0xf]
    %v140 = vld [vmem:[#allocation2 + $0x24] sm:$0xff]
    %v141 = vld [vmem:[#allocation2 + $0x2c] sm:$0xf]
    %v142 = vld [vmem:[%s2] sm:$0x7]
    %v144 = vlaneseq
    %v145 = vshrl.u32 %v144, 7
    %v146 = vsub.s32 0, %v145
    %v147 = vrot.slane %v142, %v146
    %v148 = vlaneseq
    %v149 = vshrl.u32 %v148, 7
    %v150 = vsub.s32 1, %v149
    %v151 = vrot.slane %v142, %v150
    %v152 = vlaneseq
    %v153 = vshrl.u32 %v152, 7
    %v154 = vsub.s32 2, %v153
    %v155 = vrot.slane %v142, %v154
    %v167 = vunpack.c.l.b16 %v134
    %v168 = vunpack.c.h.b16 %v134
    %v169 = vunpack.c.l.b16 %v135
    %v170 = vunpack.c.l.b16 %v136
    %v171 = vunpack.c.h.b16 %v136
    %v172 = vunpack.c.l.b16 %v137
    %v173 = vunpack.c.l.b16 %v138
    %v174 = vunpack.c.h.b16 %v138
    %v175 = vunpack.c.l.b16 %v139
    %v176 = vunpack.c.l.b16 %v140
    %v177 = vunpack.c.h.b16 %v140
    %v178 = vunpack.c.l.b16 %v141
    %v179 = vpack.c.b16 %v170, %v167
    %v180 = vpack.c.b16 %v171, %v168
    %v181 = vpack.c.b16 %v172, %v169
    %v182 = vpack.c.b16 %v176, %v173
    %v183 = vpack.c.b16 %v177, %v174
    %v184 = vpack.c.b16 %v178, %v175
    %vm191 = vcmask 261120
    %v193 = vsel %vm191, %v91, 0
    %195 = vmatprep.subr.bf16.mxu0 %v180
    %196 = vmatpush1.bf16.msra.mxu0 %v179
    %197 = vmatprep.subr.bf16.mxu0 %v183
    %198 = vmatpush1.bf16.msra.mxu0 %v182
    %199 = vmatprep.subr.bf16.mxu0 0
    %200 = vmatpush1.bf16.msra.mxu0 0
    %201 = vmatprep.subr.bf16.mxu0 0
    %202 = vmatpush1.bf16.msra.mxu0 0
    %203 = vmatprep.subr.bf16.mxu0 0
    %204 = vmatpush1.bf16.msra.mxu0 0
    %205 = vmatprep.subr.bf16.mxu0 0
    %206 = vmatpush1.bf16.msra.mxu0 0
    %207 = vmatprep.subr.bf16.mxu0 0
    %208 = vmatpush1.bf16.msra.mxu0 0
    %209 = vmatprep.subr.bf16.mxu0 0
    %210 = vmatpush1.bf16.msra.mxu0 0
    %211 = vmatprep.subr.bf16.mxu0 0
    %212 = vmatpush1.bf16.msra.mxu0 0
    %213 = vmatprep.subr.bf16.mxu0 0
    %214 = vmatpush1.bf16.msra.mxu0 0
    %215 = vmatprep.subr.bf16.mxu0 0
    %216 = vmatpush1.bf16.msra.mxu0 0
    %217 = vmatprep.subr.bf16.mxu0 0
    %218 = vmatpush1.bf16.msra.mxu0 0
    %219 = vmatprep.subr.bf16.mxu0 0
    %220 = vmatpush1.bf16.msra.mxu0 0
    %221 = vmatprep.subr.bf16.mxu0 0
    %222 = vmatpush1.bf16.msra.mxu0 0
    %223 = vmatprep.subr.bf16.mxu0 0
    %224 = vmatpush1.bf16.msra.mxu0 0
    %225 = vmatprep.subr.bf16.mxu0 0
    %226 = vmatpush1.bf16.msra.mxu0 0
    %227 = vmatprep.mubr.bf16.mxu0 0
    %228 = vmatmul.mubr.bf16.gmra.mrb[0].mxu0 %v193
    %v229 = vpop.f32.mrb[0].mxu0
    %v230 = vadd.f32 %v147, %v229
    %v231 = vpop.f32.mrb[0].mxu0
    %v232 = vadd.f32 %v151, %v231
    %v233 = vpop.f32.mrb[0].mxu0
    %v234 = vpop.f32.mrb[0].mxu0
    %235 = vdwg.mxu0
    %236 = vmatprep.subr.bf16.mxu0 0
    %237 = vmatpush1.bf16.msra.mxu0 %v181
    %238 = vmatprep.subr.bf16.mxu0 0
    %239 = vmatpush1.bf16.msra.mxu0 %v184
    %240 = vmatprep.subr.bf16.mxu0 0
    %241 = vmatpush1.bf16.msra.mxu0 0
    %242 = vmatprep.subr.bf16.mxu0 0
    %243 = vmatpush1.bf16.msra.mxu0 0
    %244 = vmatprep.subr.bf16.mxu0 0
    %245 = vmatpush1.bf16.msra.mxu0 0
    %246 = vmatprep.subr.bf16.mxu0 0
    %247 = vmatpush1.bf16.msra.mxu0 0
    %248 = vmatprep.subr.bf16.mxu0 0
    %249 = vmatpush1.bf16.msra.mxu0 0
    %250 = vmatprep.subr.bf16.mxu0 0
    %251 = vmatpush1.bf16.msra.mxu0 0
    %252 = vmatprep.subr.bf16.mxu0 0
    %253 = vmatpush1.bf16.msra.mxu0 0
    %254 = vmatprep.subr.bf16.mxu0 0
    %255 = vmatpush1.bf16.msra.mxu0 0
    %256 = vmatprep.subr.bf16.mxu0 0
    %257 = vmatpush1.bf16.msra.mxu0 0
    %258 = vmatprep.subr.bf16.mxu0 0
    %259 = vmatpush1.bf16.msra.mxu0 0
    %260 = vmatprep.subr.bf16.mxu0 0
    %261 = vmatpush1.bf16.msra.mxu0 0
    %262 = vmatprep.subr.bf16.mxu0 0
    %263 = vmatpush1.bf16.msra.mxu0 0
    %264 = vmatprep.subr.bf16.mxu0 0
    %265 = vmatpush1.bf16.msra.mxu0 0
    %266 = vmatprep.subr.bf16.mxu0 0
    %267 = vmatpush1.bf16.msra.mxu0 0
    %268 = vmatprep.mubr.bf16.mxu0 0
    %269 = vmatmul.mubr.bf16.gmra.mrb[0].mxu0 %v193
    %v270 = vpop.f32.mrb[0].mxu0
    %v271 = vadd.f32 %v155, %v270
    %v272 = vpop.f32.mrb[0].mxu0
    %v273 = vpop.f32.mrb[0].mxu0
    %v274 = vpop.f32.mrb[0].mxu0
    %275 = vdwg.mxu0
    %v276 = vstv %s132
    %v277 = vstv %s133
    %v278 = vstv %s92
    %v279 = vmul.f32 %v230, %v278
    %v280 = vmul.f32 %v232, %v278
    %v281 = vmul.f32 %v271, %v278
    %v282 = vstv %s102
    %v283 = vadd.f32 %v279, %v282
    %v284 = vadd.f32 %v280, %v282
    %v285 = vadd.f32 %v281, %v282
    %v286 = vmax.f32 %v283, 0.0
    %v287 = vmax.f32 %v284, 0.0
    %v288 = vmax.f32 %v285, 0.0
    %v289 = vstv %s112
    %v290 = vmul.f32 %v286, %v289
    %v291 = vmul.f32 %v287, %v289
    %v292 = vmul.f32 %v288, %v289
    %v293 = vadd.f32 %v276, %v290
    %v294 = vadd.f32 %v276, %v291
    %v295 = vadd.f32 %v276, %v292
    %v296 = vstv %s122
    %v297 = vmul.f32 %v286, %v296
    %v298 = vmul.f32 %v287, %v296
    %v299 = vmul.f32 %v288, %v296
    %v300 = vadd.f32 %v277, %v297
    %v301 = vadd.f32 %v277, %v298
    %v302 = vadd.f32 %v277, %v299
    %v303 = vstv %s93
    %v304 = vmul.f32 %v230, %v303
    %v305 = vmul.f32 %v232, %v303
    %v306 = vmul.f32 %v271, %v303
    %v307 = vstv %s103
    %v308 = vadd.f32 %v304, %v307
    %v309 = vadd.f32 %v305, %v307
    %v310 = vadd.f32 %v306, %v307
    %v311 = vmax.f32 %v308, 0.0
    %v312 = vmax.f32 %v309, 0.0
    %v313 = vmax.f32 %v310, 0.0
    %v314 = vstv %s113
    %v315 = vmul.f32 %v311, %v314
    %v316 = vmul.f32 %v312, %v314
    %v317 = vmul.f32 %v313, %v314
    %v318 = vadd.f32 %v293, %v315
    %v319 = vadd.f32 %v294, %v316
    %v320 = vadd.f32 %v295, %v317
    %v321 = vstv %s123
    %v322 = vmul.f32 %v311, %v321
    %v323 = vmul.f32 %v312, %v321
    %v324 = vmul.f32 %v313, %v321
    %v325 = vadd.f32 %v300, %v322
    %v326 = vadd.f32 %v301, %v323
    %v327 = vadd.f32 %v302, %v324
    %v328 = vstv %s94
    %v329 = vmul.f32 %v230, %v328
    %v330 = vmul.f32 %v232, %v328
    %v331 = vmul.f32 %v271, %v328
    %v332 = vstv %s104
    %v333 = vadd.f32 %v329, %v332
    %v334 = vadd.f32 %v330, %v332
    %v335 = vadd.f32 %v331, %v332
    %v336 = vmax.f32 %v333, 0.0
    %v337 = vmax.f32 %v334, 0.0
    %v338 = vmax.f32 %v335, 0.0
    %v339 = vstv %s114
    %v340 = vmul.f32 %v336, %v339
    %v341 = vmul.f32 %v337, %v339
    %v342 = vmul.f32 %v338, %v339
    %v343 = vadd.f32 %v318, %v340
    %v344 = vadd.f32 %v319, %v341
    %v345 = vadd.f32 %v320, %v342
    %v346 = vstv %s124
    %v347 = vmul.f32 %v336, %v346
    %v348 = vmul.f32 %v337, %v346
    %v349 = vmul.f32 %v338, %v346
    %v350 = vadd.f32 %v325, %v347
    %v351 = vadd.f32 %v326, %v348
    %v352 = vadd.f32 %v327, %v349
    %v353 = vstv %s95
    %v354 = vmul.f32 %v230, %v353
    %v355 = vmul.f32 %v232, %v353
    %v356 = vmul.f32 %v271, %v353
    %v357 = vstv %s105
    %v358 = vadd.f32 %v354, %v357
    %v359 = vadd.f32 %v355, %v357
    %v360 = vadd.f32 %v356, %v357
    %v361 = vmax.f32 %v358, 0.0
    %v362 = vmax.f32 %v359, 0.0
    %v363 = vmax.f32 %v360, 0.0
    %v364 = vstv %s115
    %v365 = vmul.f32 %v361, %v364
    %v366 = vmul.f32 %v362, %v364
    %v367 = vmul.f32 %v363, %v364
    %v368 = vadd.f32 %v343, %v365
    %v369 = vadd.f32 %v344, %v366
    %v370 = vadd.f32 %v345, %v367
    %v371 = vstv %s125
    %v372 = vmul.f32 %v361, %v371
    %v373 = vmul.f32 %v362, %v371
    %v374 = vmul.f32 %v363, %v371
    %v375 = vadd.f32 %v350, %v372
    %v376 = vadd.f32 %v351, %v373
    %v377 = vadd.f32 %v352, %v374
    %v378 = vstv %s96
    %v379 = vmul.f32 %v230, %v378
    %v380 = vmul.f32 %v232, %v378
    %v381 = vmul.f32 %v271, %v378
    %v382 = vstv %s106
    %v383 = vadd.f32 %v379, %v382
    %v384 = vadd.f32 %v380, %v382
    %v385 = vadd.f32 %v381, %v382
    %v386 = vmax.f32 %v383, 0.0
    %v387 = vmax.f32 %v384, 0.0
    %v388 = vmax.f32 %v385, 0.0
    %v389 = vstv %s116
    %v390 = vmul.f32 %v386, %v389
    %v391 = vmul.f32 %v387, %v389
    %v392 = vmul.f32 %v388, %v389
    %v393 = vadd.f32 %v368, %v390
    %v394 = vadd.f32 %v369, %v391
    %v395 = vadd.f32 %v370, %v392
    %v396 = vstv %s126
    %v397 = vmul.f32 %v386, %v396
    %v398 = vmul.f32 %v387, %v396
    %v399 = vmul.f32 %v388, %v396
    %v400 = vadd.f32 %v375, %v397
    %v401 = vadd.f32 %v376, %v398
    %v402 = vadd.f32 %v377, %v399
    %v403 = vstv %s97
    %v404 = vmul.f32 %v230, %v403
    %v405 = vmul.f32 %v232, %v403
    %v406 = vmul.f32 %v271, %v403
    %v407 = vstv %s107
    %v408 = vadd.f32 %v404, %v407
    %v409 = vadd.f32 %v405, %v407
    %v410 = vadd.f32 %v406, %v407
    %v411 = vmax.f32 %v408, 0.0
    %v412 = vmax.f32 %v409, 0.0
    %v413 = vmax.f32 %v410, 0.0
    %v414 = vstv %s117
    %v415 = vmul.f32 %v411, %v414
    %v416 = vmul.f32 %v412, %v414
    %v417 = vmul.f32 %v413, %v414
    %v418 = vadd.f32 %v393, %v415
    %v419 = vadd.f32 %v394, %v416
    %v420 = vadd.f32 %v395, %v417
    %v421 = vstv %s127
    %v422 = vmul.f32 %v411, %v421
    %v423 = vmul.f32 %v412, %v421
    %v424 = vmul.f32 %v413, %v421
    %v425 = vadd.f32 %v400, %v422
    %v426 = vadd.f32 %v401, %v423
    %v427 = vadd.f32 %v402, %v424
    %v428 = vstv %s98
    %v429 = vmul.f32 %v230, %v428
    %v430 = vmul.f32 %v232, %v428
    %v431 = vmul.f32 %v271, %v428
    %v432 = vstv %s108
    %v433 = vadd.f32 %v429, %v432
    %v434 = vadd.f32 %v430, %v432
    %v435 = vadd.f32 %v431, %v432
    %v436 = vmax.f32 %v433, 0.0
    %v437 = vmax.f32 %v434, 0.0
    %v438 = vmax.f32 %v435, 0.0
    %v439 = vstv %s118
    %v440 = vmul.f32 %v436, %v439
    %v441 = vmul.f32 %v437, %v439
    %v442 = vmul.f32 %v438, %v439
    %v443 = vadd.f32 %v418, %v440
    %v444 = vadd.f32 %v419, %v441
    %v445 = vadd.f32 %v420, %v442
    %v446 = vstv %s128
    %v447 = vmul.f32 %v436, %v446
    %v448 = vmul.f32 %v437, %v446
    %v449 = vmul.f32 %v438, %v446
    %v450 = vadd.f32 %v425, %v447
    %v451 = vadd.f32 %v426, %v448
    %v452 = vadd.f32 %v427, %v449
    %v453 = vstv %s99
    %v454 = vmul.f32 %v230, %v453
    %v455 = vmul.f32 %v232, %v453
    %v456 = vmul.f32 %v271, %v453
    %v457 = vstv %s109
    %v458 = vadd.f32 %v454, %v457
    %v459 = vadd.f32 %v455, %v457
    %v460 = vadd.f32 %v456, %v457
    %v461 = vmax.f32 %v458, 0.0
    %v462 = vmax.f32 %v459, 0.0
    %v463 = vmax.f32 %v460, 0.0
    %v464 = vstv %s119
    %v465 = vmul.f32 %v461, %v464
    %v466 = vmul.f32 %v462, %v464
    %v467 = vmul.f32 %v463, %v464
    %v468 = vadd.f32 %v443, %v465
    %v469 = vadd.f32 %v444, %v466
    %v470 = vadd.f32 %v445, %v467
    %v471 = vstv %s129
    %v472 = vmul.f32 %v461, %v471
    %v473 = vmul.f32 %v462, %v471
    %v474 = vmul.f32 %v463, %v471
    %v475 = vadd.f32 %v450, %v472
    %v476 = vadd.f32 %v451, %v473
    %v477 = vadd.f32 %v452, %v474
    %v478 = vstv %s100
    %v479 = vmul.f32 %v230, %v478
    %v480 = vmul.f32 %v232, %v478
    %v481 = vmul.f32 %v271, %v478
    %v482 = vstv %s110
    %v483 = vadd.f32 %v479, %v482
    %v484 = vadd.f32 %v480, %v482
    %v485 = vadd.f32 %v481, %v482
    %v486 = vmax.f32 %v483, 0.0
    %v487 = vmax.f32 %v484, 0.0
    %v488 = vmax.f32 %v485, 0.0
    %v489 = vstv %s120
    %v490 = vmul.f32 %v486, %v489
    %v491 = vmul.f32 %v487, %v489
    %v492 = vmul.f32 %v488, %v489
    %v493 = vadd.f32 %v468, %v490
    %v494 = vadd.f32 %v469, %v491
    %v495 = vadd.f32 %v470, %v492
    %v496 = vstv %s130
    %v497 = vmul.f32 %v486, %v496
    %v498 = vmul.f32 %v487, %v496
    %v499 = vmul.f32 %v488, %v496
    %v500 = vadd.f32 %v475, %v497
    %v501 = vadd.f32 %v476, %v498
    %v502 = vadd.f32 %v477, %v499
    %v503 = vstv %s101
    %v504 = vmul.f32 %v230, %v503
    %v505 = vmul.f32 %v232, %v503
    %v506 = vmul.f32 %v271, %v503
    %v507 = vstv %s111
    %v508 = vadd.f32 %v504, %v507
    %v509 = vadd.f32 %v505, %v507
    %v510 = vadd.f32 %v506, %v507
    %v511 = vmax.f32 %v508, 0.0
    %v512 = vmax.f32 %v509, 0.0
    %v513 = vmax.f32 %v510, 0.0
    %v514 = vstv %s121
    %v515 = vmul.f32 %v511, %v514
    %v516 = vmul.f32 %v512, %v514
    %v517 = vmul.f32 %v513, %v514
    %v518 = vadd.f32 %v493, %v515
    %v519 = vadd.f32 %v494, %v516
    %v520 = vadd.f32 %v495, %v517
    %v521 = vstv %s131
    %v522 = vmul.f32 %v511, %v521
    %v523 = vmul.f32 %v512, %v521
    %v524 = vmul.f32 %v513, %v521
    %v525 = vadd.f32 %v500, %v522
    %v526 = vadd.f32 %v501, %v523
    %v527 = vadd.f32 %v502, %v524
    %v528 = vmax.f32 %v518, 0.0
    %v529 = vmax.f32 %v519, 0.0
    %v530 = vmax.f32 %v520, 0.0
    %v533 = vcombine.low %v528, %v529
    %535 = vst [vmem:[%s7] sm:$0x33] %v533
    %536 = vst [vmem:[%s7 + $0x8] sm:$0x3] %v530
    %v537 = vmax.f32 %v525, 0.0
    %v538 = vmax.f32 %v526, 0.0
    %v539 = vmax.f32 %v527, 0.0
    %v543 = vcombine.low %v537, %v538
    %v544 = vrot.slane %v543, 6
    %v545 = vrot.slane %v539, 6
    %548 = vst [vmem:[%s7] sm:$0xcc] %v544
    %549 = vst [vmem:[%s7 + $0x8] sm:$0xc] %v545
    // Predicated region
    $region50: #{_decoder_forward_impl.1} parent=1 // pred_check
      _
    $region51: #{_decoder_forward_impl.1} parent=1 // pred_check_branch
      %551 = sbr.rel (0) target = $region53
    $region52: #{_decoder_forward_impl.1} parent=1 // pred_region
      _
    $region53: #{_decoder_forward_impl.1} parent=1 // pred_fallthru
      _
    // Predicated region
    $region54: #{_decoder_forward_impl.1} parent=1 // pred_check
      _
    $region55: #{_decoder_forward_impl.1} parent=1 // pred_check_branch
      %553 = sbr.rel (0) target = $region57
    $region56: #{_decoder_forward_impl.1} parent=1 // pred_region
      _
    $region57: #{_decoder_forward_impl.1} parent=1 // pred_fallthru
      _
    %554 = vsyncpa [#allocation3], 1
    %555 = vsyncpa [#allocation4], 1
    %556 = vsyncpa [#allocation7], 1
    %557 = vsyncpa [#allocation10], 1

</llo_original>
